<compile_context>
chip_gen: v6e
topology: v6e:2x2x1
jax: 0.10.0
libtpu: 0.0.40
codegen_flags: <defaults>
</compile_context>

<pallas_src>
import functools
import math

import jax
import jax.numpy as jnp
from jax.experimental import pallas as pl
from jax.experimental.pallas import tpu as pltpu


# --------------------------------------------------------------------------- #
# Kernel: per-row shifted softmax denominator  acc_i = sum_j exp(s_ij - shift) #
# where s_ij = <zz_row_i, zz_col_j> and zz_col already carries the 1/temp.     #
# --------------------------------------------------------------------------- #
def _pucon_denom_kernel(zz_row_ref, zz_col_ref, out_ref, acc_exp, *, shift):
    k = pl.program_id(1)

    @pl.when(k == 0)
    def _init():
        acc_exp[...] = jnp.zeros_like(acc_exp)

    # (tm, tk) similarity tile on the MXU: bf16 operands, f32 accumulation.
    d = jax.lax.dot_general(
        zz_row_ref[...], zz_col_ref[...],
        (((1,), (1,)), ((), ())), preferred_element_type=jnp.float32)

    # Shift-stabilized exp (arguments <= ~0 since rows are unit-norm and the
    # columns are pre-scaled by 1/temp), then a lane reduce into the accumulator.
    acc_exp[...] += jnp.sum(jnp.exp(d - shift), axis=1, keepdims=True)

    @pl.when(k == pl.num_programs(1) - 1)
    def _finalize():
        out_ref[...] = acc_exp[...]


# --------------------------------------------------------------------------- #
# Tiling helpers                                                               #
# --------------------------------------------------------------------------- #
def _round_up(x, m):
    return ((x + m - 1) // m) * m


def _largest_divisor(total, cap, align):
    """Largest divisor of `total` that is <= cap and a multiple of `align`.
    `total` is assumed to be a multiple of `align`."""
    cap = max(align, min(cap, total))
    for t in range(cap - cap % align, align - 1, -align):
        if total % t == 0:
            return t
    return align


def _choose_tiles(mp, c):
    """Pick (tm, tk) for the padded row count `mp` and feature dim `c`."""
    # Column (reduction-axis) tile: lane-aligned, ~512; only costs VMEM.
    tk = _largest_divisor(mp, cap=512, align=128)

    # Row tile: tm ~ 2*C (review: keep the column-slab HBM stream hidden under
    # the M^2-exp EUP floor), 16-aligned for bf16 sublane packing, but capped at
    # mp // 2 so the "parallel" (megacore) axis always has >= 2 tiles on v7x.
    tm_target = max(256, min(1024, _round_up(2 * c, 16)))
    tm_cap = min(tm_target, max(16, (mp // 2) - (mp // 2) % 16))
    tm = _largest_divisor(mp, cap=tm_cap, align=16)

    # Crude VMEM re-budget (v7x has only 64 MiB): double-buffered bf16 slabs +
    # f32 (tm, tk) similarity tile + its exp'd copy must leave headroom.
    def vmem_bytes(tm_, tk_):
        return (2 * tm_ * c * 2) + (2 * tk_ * c * 2) + (2 * tm_ * tk_ * 4) + (2 * tm_ * 4)

    budget = 40 * 1024 * 1024
    while tm > 16 and vmem_bytes(tm, tk) > budget:
        tm = _largest_divisor(mp, cap=tm // 2, align=16)
    while tk > 128 and vmem_bytes(tm, tk) > budget:
        tk = _largest_divisor(mp, cap=tk // 2, align=128)
    return tm, tk


# --------------------------------------------------------------------------- #
# Wrapper                                                                      #
# --------------------------------------------------------------------------- #
def pucon_loss(z, z_aug, labels, *, temperature=0.5, reduction="mean"):
    """z, z_aug: (N, C) features; labels: (N,) in {0, 1}."""
    n, c = z.shape
    m = 2 * n
    inv_temp = 1.0 / float(temperature)

    # torch.nn.functional.normalize(x, dim=1): x / max(||x||_2, 1e-12) (f32).
    zf = z.astype(jnp.float32)
    zaf = z_aug.astype(jnp.float32)
    zn = zf / jnp.maximum(jnp.sqrt(jnp.sum(zf * zf, axis=1, keepdims=True)), 1e-12)
    zan = zaf / jnp.maximum(jnp.sqrt(jnp.sum(zaf * zaf, axis=1, keepdims=True)), 1e-12)
    zz_f32 = jnp.concatenate([zn, zan], axis=0)                       # (M, C) f32

    # MXU operands: rows unscaled bf16, columns pre-scaled by 1/temp before the
    # bf16 cast, so the in-kernel exp argument is just (d - inv_temp).
    zz_rows = zz_f32.astype(jnp.bfloat16)
    zz_cols = (zz_f32 * inv_temp).astype(jnp.bfloat16)

    # Pad the row count to a lane-aligned multiple (zero rows): no degenerate
    # single-tile grids, and padded columns contribute exactly exp(-inv_temp).
    mp = _round_up(m, 128)
    n_pad = mp - m
    if n_pad:
        zz_rows = jnp.pad(zz_rows, ((0, n_pad), (0, 0)))
        zz_cols = jnp.pad(zz_cols, ((0, n_pad), (0, 0)))

    tm, tk = _choose_tiles(mp, c)
    grid = (mp // tm, mp // tk)

    acc = pl.pallas_call(
        functools.partial(_pucon_denom_kernel, shift=inv_temp),
        out_shape=jax.ShapeDtypeStruct((mp, 1), jnp.float32),
        grid_spec=pltpu.PrefetchScalarGridSpec(
            num_scalar_prefetch=0,
            grid=grid,
            in_specs=[
                pl.BlockSpec((tm, c), lambda i, k: (i, 0)),   # row slab (bf16)
                pl.BlockSpec((tk, c), lambda i, k: (k, 0)),   # column slab (bf16, 1/temp folded in)
            ],
            out_specs=pl.BlockSpec((tm, 1), lambda i, k: (i, 0)),
            scratch_shapes=[pltpu.VMEM((tm, 1), jnp.float32)],
        ),
        compiler_params=pltpu.CompilerParams(
            dimension_semantics=("parallel", "arbitrary"),
            vmem_limit_bytes=48 * 1024 * 1024,
        ),
    )(zz_rows, zz_cols)

    # ----------------------- O(M) / O(M*C) epilogue (plain JAX) -----------------------
    acc = acc[:m, 0]                                                  # valid rows only

    # Diagonal term, computed with the same bf16-rounded operands as the MXU tile.
    self_sim = jnp.sum(zz_rows[:m].astype(jnp.float32) * zz_cols[:m].astype(jnp.float32),
                       axis=1)
    denom = acc - jnp.exp(self_sim - inv_temp) - n_pad * math.exp(-inv_temp)
    denom = jnp.maximum(denom, jnp.float32(1e-30))                    # extreme-temp guard
    log_denom = jnp.log(denom) + inv_temp                             # log sum_{j != i} exp(s_ij)

    # SelfSupCon: exactly one aug-pair term per row: -log softmax(s[i, i +- N]).
    pair_logit = jnp.tile(jnp.sum(zn * zan, axis=1) * inv_temp, 2)    # exact f32
    unsup = log_denom - pair_logit

    # SupCon: (cnt - 1) same-label off-diagonal terms per positive row.
    lab2 = jnp.tile(labels.astype(jnp.float32), 2)                    # (M,)
    cnt = jnp.sum(lab2)                                               # = 2 * #positives
    lab_proj = zz_f32.T @ lab2                                        # (C,)
    slab = (zz_f32 @ lab_proj) * inv_temp                             # (M,) sum_j lab_j * s_ij (incl. diag)
    self_f32 = jnp.sum(zz_f32 * zz_f32, axis=1) * inv_temp            # diag s_ii (f32)
    den = cnt - 1.0
    den_safe = jnp.maximum(den, 1.0)                                  # guard #positives == 0
    sup = (den * log_denom - (slab - self_f32)) / den_safe

    # PU selection: labeled positives -> supervised risk, unlabeled -> self-sup risk.
    # TODO(synk): labels are assumed binary {0,1}; other values route to the unsup branch.
    loss_vec = jnp.where(lab2 == 1.0, sup, unsup)
    if reduction == "mean":
        return jnp.mean(loss_vec)
    # reduction='none': row-ordered losses (torch returns the positives-first
    # concatenation; same multiset of values for binary labels).
    return loss_vec


# --------------------------------------------------------------------------- #
# Pure-JAX f32 reference mirroring the PyTorch module (reduction='mean')       #
# --------------------------------------------------------------------------- #
def _pucon_loss_ref(z, z_aug, labels, temperature=0.5):
    def norm(x):
        return x / jnp.maximum(jnp.linalg.norm(x, axis=1, keepdims=True), 1e-12)

    n = z.shape[0]
    zz = jnp.concatenate([norm(z), norm(z_aug)], axis=0)
    s = zz @ zz.T / temperature
    m = 2 * n
    eye = jnp.eye(m)
    e = jnp.exp(s) * (1.0 - eye)
    sfx = e / jnp.sum(e, axis=1, keepdims=True)
    neg_log = jnp.where(sfx != 0, -jnp.log(jnp.where(sfx != 0, sfx, 1.0)), 0.0)

    aug_mask = (jnp.abs(jnp.arange(m)[:, None] - jnp.arange(m)[None, :]) == n)
    unsup = jnp.sum(neg_log * aug_mask, axis=1)

    lab = jnp.tile(labels.astype(jnp.float32), 2)
    eq = (lab[:, None] == lab[None, :]).astype(jnp.float32)
    sup = jnp.sum(neg_log * eq, axis=1) / (jnp.sum(eq, axis=1) - 1.0)

    loss_vec = jnp.where(lab == 1.0, sup, unsup)
    return jnp.mean(loss_vec)


if __name__ == "__main__":
    key = jax.random.PRNGKey(0)
    k1, k2 = jax.random.split(key)
    N, C = 8, 32
    z = jax.random.normal(k1, (N, C), dtype=jnp.float32)
    z_aug = z + 0.1 * jax.random.normal(k2, (N, C), dtype=jnp.float32)
    labels = jnp.array([1, 0, 1, 0, 1, 1, 0, 0], dtype=jnp.int32)

    loss = pucon_loss(z, z_aug, labels, temperature=0.5, reduction="mean")
    loss = jax.block_until_ready(loss)

    ref = _pucon_loss_ref(z, z_aug, labels, temperature=0.5)
    # Tolerance relaxed vs. the f32 reference: the similarity matmul uses bf16 MXU
    # operands (observed error well under 1%).
    assert jnp.allclose(loss, ref, rtol=2e-2, atol=2e-2), (loss, ref)
    print("KERNEL_OK")
</pallas_src>

<mosaic_0001>
module attributes {stable_mosaic.version = 11 : i64} {
  func.func @_pucon_denom_kernel(%arg0: i32, %arg1: i32, %arg2: memref<64x32xbf16, #tpu.memory_space<vmem>>, %arg3: memref<128x32xbf16, #tpu.memory_space<vmem>>, %arg4: memref<64x1xf32, #tpu.memory_space<vmem>>, %arg5: memref<64x1xf32, #tpu.memory_space<vmem>>) attributes {dimension_semantics = [#tpu.dimension_semantics<parallel>, #tpu.dimension_semantics<arbitrary>], iteration_bounds = array<i64: 2, 1>, scalar_prefetch = 0 : i64, scratch_operands = 1 : i64, tpu.core_type = #tpu.core_type<tc>, window_params = [{transform_indices = @transform_0, window_bounds = array<i64: 64, 32>}, {transform_indices = @transform_1, window_bounds = array<i64: 128, 32>}, {transform_indices = @transform_2, window_bounds = array<i64: 64, 1>}]} {
    %c0_i32 = arith.constant 0 : i32
    %0 = arith.cmpi eq, %arg1, %c0_i32 : i32
    %1 = arith.extui %0 : i1 to i32
    %c0_i32_0 = arith.constant 0 : i32
    %2 = arith.cmpi ne, %1, %c0_i32_0 : i32
    scf.if %2 {
      %cst_12 = arith.constant 0.000000e+00 : f32
      %17 = vector.broadcast %cst_12 : f32 to vector<64x1xf32>
      %c0_13 = arith.constant 0 : index
      %c0_14 = arith.constant 0 : index
      %18 = vector.load %arg5[%c0_13, %c0_14] : memref<64x1xf32, #tpu.memory_space<vmem>>, vector<64x1xf32>
      tpu.vector_store %arg5[%c0_13, %c0_14], %17 {strides = array<i32>} : memref<64x1xf32, #tpu.memory_space<vmem>>, vector<64x1xf32>,
    } else {
    }
    %c0 = arith.constant 0 : index
    %c0_1 = arith.constant 0 : index
    %3 = vector.load %arg2[%c0, %c0_1] : memref<64x32xbf16, #tpu.memory_space<vmem>>, vector<64x32xbf16>
    %c0_2 = arith.constant 0 : index
    %c0_3 = arith.constant 0 : index
    %4 = vector.load %arg3[%c0_2, %c0_3] : memref<128x32xbf16, #tpu.memory_space<vmem>>, vector<128x32xbf16>
    %cst = arith.constant dense<0.000000e+00> : vector<64x128xf32>
    %5 = tpu.matmul %3, %4, %cst {dimension_numbers = #tpu.dot_dimension_numbers<[1], [1], [0], [0], [0, 0, 1, 0], [], []>} : vector<64x32xbf16>, vector<128x32xbf16>, vector<64x128xf32> -> vector<64x128xf32>
    %c0_4 = arith.constant 0 : index
    %c0_5 = arith.constant 0 : index
    %6 = vector.load %arg5[%c0_4, %c0_5] : memref<64x1xf32, #tpu.memory_space<vmem>>, vector<64x1xf32>
    %cst_6 = arith.constant 2.000000e+00 : f32
    %7 = vector.broadcast %cst_6 : f32 to vector<64x128xf32>
    %8 = arith.subf %5, %7 : vector<64x128xf32>
    %9 = math.exp %8 : vector<64x128xf32>
    %cst_7 = arith.constant dense<0.000000e+00> : vector<64xf32>
    %10 = vector.multi_reduction <add>, %9, %cst_7 [1] : vector<64x128xf32> to vector<64xf32>
    %11 = vector.shape_cast %10 : vector<64xf32> to vector<64x1xf32>
    %12 = arith.addf %6, %11 : vector<64x1xf32>
    %c0_8 = arith.constant 0 : index
    %c0_9 = arith.constant 0 : index
    %13 = vector.load %arg5[%c0_8, %c0_9] : memref<64x1xf32, #tpu.memory_space<vmem>>, vector<64x1xf32>
    tpu.vector_store %arg5[%c0_8, %c0_9], %12 {strides = array<i32>} : memref<64x1xf32, #tpu.memory_space<vmem>>, vector<64x1xf32>,
    %c0_i32_10 = arith.constant 0 : i32
    %14 = arith.cmpi eq, %arg1, %c0_i32_10 : i32
    %15 = arith.extui %14 : i1 to i32
    %c0_i32_11 = arith.constant 0 : i32
    %16 = arith.cmpi ne, %15, %c0_i32_11 : i32
    scf.if %16 {
      %c0_12 = arith.constant 0 : index
      %c0_13 = arith.constant 0 : index
      %17 = vector.load %arg5[%c0_12, %c0_13] : memref<64x1xf32, #tpu.memory_space<vmem>>, vector<64x1xf32>
      %c0_14 = arith.constant 0 : index
      %c0_15 = arith.constant 0 : index
      %18 = vector.load %arg4[%c0_14, %c0_15] : memref<64x1xf32, #tpu.memory_space<vmem>>, vector<64x1xf32>
      tpu.vector_store %arg4[%c0_14, %c0_15], %17 {strides = array<i32>} : memref<64x1xf32, #tpu.memory_space<vmem>>, vector<64x1xf32>,
    } else {
    }
    return
  }
  func.func @transform_0(%arg0: i32, %arg1: i32) -> (i32, i32) {
    %c0_i32 = arith.constant 0 : i32
    %c0_i32_0 = arith.constant 0 : i32
    return %arg0, %c0_i32 : i32, i32
  }
  func.func @transform_1(%arg0: i32, %arg1: i32) -> (i32, i32) {
    %c0_i32 = arith.constant 0 : i32
    %c0_i32_0 = arith.constant 0 : i32
    return %arg1, %c0_i32 : i32, i32
  }
  func.func @transform_2(%arg0: i32, %arg1: i32) -> (i32, i32) {
    %c0_i32 = arith.constant 0 : i32
    %c0_i32_0 = arith.constant 0 : i32
    return %arg0, %c0_i32 : i32, i32
  }
}

</mosaic_0001>

<llo_original>
// kernel: tpu_custom_call.1
$region0: #{tpu_custom_call.1}
  #allocation0 [shape = 'u32[]', space=smem, size = 0x4, offset = 0x4, fixed_abs, tag = 'smem constant byte address 0x4 - core index']
  #allocation1 [shape = 'u32[144,128]{1,0:T(1,128)}', space=vmem, size = 0x12000, scoped, tag = 'internal scratch']
  #allocation2 [shape = 'f32[64,1]{1,0:T(8,128)}', space=vmem, size = 0x8000, scoped, tag = 'scratch operand']
  %s0 = inlined_call_operand.vmem [shape: bf16[128,32], index: 0, kind: input, shape index: {}]
  %s1 = inlined_call_operand.vmem [shape: bf16[128,32], index: 1, kind: input, shape index: {}]
  %s2 = inlined_call_operand.vmem [shape: f32[128,1], index: 2, kind: output, shape index: {}]
  %s3 = sld [smem:[#allocation0]]
  $region49: #{tpu_custom_call.1} parent=0
    _
  %s5 = ssub.s32 1, %s3
  %s6 = scalar_select 0, %s5, %s3
  loop: start=0, step=1, limit=4
  $region2: #{tpu_custom_call.1} parent=0 // loop_pre_header
    _
  $region3: #{tpu_custom_call.1} parent=0 // loop_header
    %s8 = sphi 0, %s12
    %p9 = scmp.ge.s32.totalorder %s8, 4
    %s15 = sphi 0, %s27
    %s16 = sphi 0, %s23
    %s17 = sphi 0, %s15
    %s18 = sphi 0, %s16
    %s19 = sphi 0, %s17
    %s20 = sphi 0, %s18
    %s30 = sphi 0, %s32
    %s33 = sphi 0, %s30
    %s34 = sphi 0, %s33
    %s50 = sphi 0, %s34
    %s56 = sphi 0, %s58
    %s59 = sphi 0, %s56
    %s60 = sphi 0, %s59
    %s76 = sphi 0, %s60
    %s82 = sphi 0, %s84
    %s85 = sphi 0, %s82
    %s86 = sphi 0, %s85
    %s102 = sphi 0, %s86
  $region4: #{tpu_custom_call.1} parent=0 // loop_header_branch
    %11 = sbr.rel (%p9) target = $region8
  $region5: #{tpu_custom_call.1} parent=0 // loop_body
    %s13 = ssub.s32 %s8, 1
    %s14 = ssub.s32 %s8, 2
    %s21 = sadd.s32 1, %s16
    %p22 = scmp.ge.s32.totalorder %s21, 1
    %s23 = scalar_select %p22, 0, %s21
    %s24 = sadd.s32 1, %s15
    %s25 = scalar_select %p22, %s24, %s15
    %p26 = scmp.ge.s32.totalorder %s25, 2
    %s27 = scalar_select %p26, 0, %s25
    %s28 = ssub.s32 %s15, %s27
    %p29 = scmp.eq.s32.totalorder %s28, 0
    %s31 = sadd.s32 %s30, 1
    %s32 = scalar_select %p29, %s30, %s31
    %p35 = pneg %p29
    %p36 = scmp.eq.s32.totalorder %s8, 1
    %p37 = por %p35, %p36
    %p38 = scmp.ne.s32.totalorder %s30, %s33
    %p39 = scmp.eq.s32.totalorder %s8, 0
    %p40 = por %p38, %p39
    %p41 = scmp.ne.s32.totalorder %s30, %s33
    %p42 = scmp.eq.s32.totalorder %s13, 1
    %p43 = por %p41, %p42
    %p44 = scmp.ne.s32.totalorder %s33, %s34
    %p45 = scmp.eq.s32.totalorder %s13, 0
    %p46 = por %p44, %p45
    %p47 = scmp.ne.s32.totalorder %s33, %s34
    %p48 = scmp.eq.s32.totalorder %s14, 1
    %p49 = por %p47, %p48
    %p51 = scmp.ne.s32.totalorder %s34, %s50
    %p52 = scmp.eq.s32.totalorder %s14, 0
    %p53 = por %p51, %p52
    %s54 = ssub.s32 %s16, %s23
    %p55 = scmp.eq.s32.totalorder %s54, 0
    %s57 = sadd.s32 %s56, 1
    %s58 = scalar_select %p55, %s56, %s57
    %p61 = pneg %p55
    %p62 = scmp.eq.s32.totalorder %s8, 1
    %p63 = por %p61, %p62
    %p64 = scmp.ne.s32.totalorder %s56, %s59
    %p65 = scmp.eq.s32.totalorder %s8, 0
    %p66 = por %p64, %p65
    %p67 = scmp.ne.s32.totalorder %s56, %s59
    %p68 = scmp.eq.s32.totalorder %s13, 1
    %p69 = por %p67, %p68
    %p70 = scmp.ne.s32.totalorder %s59, %s60
    %p71 = scmp.eq.s32.totalorder %s13, 0
    %p72 = por %p70, %p71
    %p73 = scmp.ne.s32.totalorder %s59, %s60
    %p74 = scmp.eq.s32.totalorder %s14, 1
    %p75 = por %p73, %p74
    %p77 = scmp.ne.s32.totalorder %s60, %s76
    %p78 = scmp.eq.s32.totalorder %s14, 0
    %p79 = por %p77, %p78
    %s80 = ssub.s32 %s15, %s27
    %p81 = scmp.eq.s32.totalorder %s80, 0
    %s83 = sadd.s32 %s82, 1
    %s84 = scalar_select %p81, %s82, %s83
    %p87 = pneg %p81
    %p88 = scmp.eq.s32.totalorder %s8, 1
    %p89 = por %p87, %p88
    %p90 = scmp.ne.s32.totalorder %s82, %s85
    %p91 = scmp.eq.s32.totalorder %s8, 0
    %p92 = por %p90, %p91
    %p93 = scmp.ne.s32.totalorder %s82, %s85
    %p94 = scmp.eq.s32.totalorder %s13, 1
    %p95 = por %p93, %p94
    %p96 = scmp.ne.s32.totalorder %s85, %s86
    %p97 = scmp.eq.s32.totalorder %s13, 0
    %p98 = por %p96, %p97
    %p99 = scmp.ne.s32.totalorder %s85, %s86
    %p100 = scmp.eq.s32.totalorder %s14, 1
    %p101 = por %p99, %p100
    %p103 = scmp.ne.s32.totalorder %s86, %s102
    %p104 = scmp.eq.s32.totalorder %s14, 0
    %p105 = por %p103, %p104
    %p106 = scmp.le.s32.totalorder 1, %s8
    %p107 = scmp.lt.s32.totalorder %s8, 3
    %p108 = pnand %p106, %p107
    %p109 = pneg %p108
    // Predicated region
    $region9: #{tpu_custom_call.1} parent=5 // pred_check
      _
    $region10: #{tpu_custom_call.1} parent=5 // pred_check_branch
      %111 = sbr.rel (%p108) target = $region12
    $region11: #{tpu_custom_call.1} parent=5 // pred_region
      %s112 = ssub.s32 %s8, 1
      // Predicated region
      $region13: #{tpu_custom_call.1} parent=11 // pred_check
        %p113 = pneg %p72
      $region14: #{tpu_custom_call.1} parent=11 // pred_check_branch
        %115 = sbr.rel (%p113) target = $region16
      $region15: #{tpu_custom_call.1} parent=11 // pred_region
        %s116 = smul.u32 16, %s18
        %p117 = scmp.lt.s32.totalorder %s116, 15
        %s118 = scalar_select %p117, %s116, 15
        %s119 = smul.addr %s118, 4
        %s120 = scalar_lea.vmem %s1, %s119
        %s121 = smul.u32 16, %s18
      $region16: #{tpu_custom_call.1} parent=11 // pred_fallthru
        _
    $region12: #{tpu_custom_call.1} parent=5 // pred_fallthru
      _
    %p122 = scmp.lt.s32.totalorder %s8, 2
    // Predicated region
    $region17: #{tpu_custom_call.1} parent=5 // pred_check
      %p123 = pneg %p122
    $region18: #{tpu_custom_call.1} parent=5 // pred_check_branch
      %125 = sbr.rel (%p123) target = $region20
    $region19: #{tpu_custom_call.1} parent=5 // pred_region
      // Predicated region
      $region21: #{tpu_custom_call.1} parent=19 // pred_check
        %p126 = pneg %p40
      $region22: #{tpu_custom_call.1} parent=19 // pred_check_branch
        %128 = sbr.rel (%p126) target = $region24
      $region23: #{tpu_custom_call.1} parent=19 // pred_region
        %s129 = smul.u32 8, %s15
        %p130 = scmp.lt.s32.totalorder %s129, 15
        %s131 = scalar_select %p130, %s129, 15
        %s132 = smul.addr %s131, 4
        %s133 = scalar_lea.vmem %s0, %s132
        %s134 = smul.u32 8, %s15
      $region24: #{tpu_custom_call.1} parent=19 // pred_fallthru
        _
    $region20: #{tpu_custom_call.1} parent=5 // pred_fallthru
      _
    %p135 = scmp.le.s32.totalorder 1, %s8
    %p136 = scmp.lt.s32.totalorder %s8, 3
    %p137 = pnand %p135, %p136
    %p138 = pneg %p137
    // Predicated region
    $region25: #{tpu_custom_call.1} parent=5 // pred_check
      _
    $region26: #{tpu_custom_call.1} parent=5 // pred_check_branch
      %140 = sbr.rel (%p137) target = $region28
    $region27: #{tpu_custom_call.1} parent=5 // pred_region
      %s141 = ssub.s32 %s8, 1
      %s142 = smul.u32 8, %s17
      %p143 = scmp.lt.s32.totalorder %s142, 15
      %s144 = scalar_select %p143, %s142, 15
      %s145 = smul.addr %s144, 4
      %s146 = scalar_lea.vmem %s0, %s145
      %p147 = pneg %p46
      %p148 = pneg %p43
      %s149 = smul.u32 16, %s18
      %p150 = scmp.lt.s32.totalorder %s149, 15
      %s151 = scalar_select %p150, %s149, 15
      %s152 = smul.addr %s151, 4
      %s153 = scalar_lea.vmem %s1, %s152
      %p154 = pneg %p72
      %p155 = pneg %p69
      %p156 = pneg %p98
      %p157 = pneg %p95
      %s158 = smul.u32 8, %s17
      %p159 = scmp.lt.s32.totalorder %s158, 15
      %s160 = scalar_select %p159, %s158, 15
      %s161 = smul.addr %s160, 8
      %s162 = scalar_lea.vmem %s2, %s161
      %s163 = smul.u32 8, %s17
      %p164 = scmp.lt.s32.totalorder %s163, 15
      %s165 = scalar_select %p164, %s163, 15
      %s166 = smul.addr %s165, 4
      %s167 = scalar_lea.vmem %s0, %s166
      %s168 = smul.u32 8, %s17
      %s169 = smul.u32 16, %s18
      %p170 = scmp.lt.s32.totalorder %s169, 15
      %s171 = scalar_select %p170, %s169, 15
      %s172 = smul.addr %s171, 4
      %s173 = scalar_lea.vmem %s1, %s172
      %s174 = smul.u32 16, %s18
      %s175 = smul.u32 8, %s17
      %p176 = scmp.lt.s32.totalorder %s175, 15
      %s177 = scalar_select %p176, %s175, 15
      %s178 = smul.addr %s177, 8
      %s179 = scalar_lea.vmem %s2, %s178
      %s180 = smul.u32 8, %s17
      %p182 = scmp.eq.s32.totalorder %s18, 0
      // Predicated region
      $region29: #{tpu_custom_call.1} parent=27 // pred_check
        %p183 = pneg %p182
      $region30: #{tpu_custom_call.1} parent=27 // pred_check_branch
        %185 = sbr.rel (%p183) target = $region32
      $region31: #{tpu_custom_call.1} parent=27 // pred_region
        %vm186 = vcmask 7168
        %187 = vst.msk [vmem:[#allocation2] sm:$0xff] %vm186, 0.0
        %188 = vst.msk [vmem:[#allocation2 + $0x8] sm:$0xff] %vm186, 0.0
        %189 = vst.msk [vmem:[#allocation2 + $0x10] sm:$0xff] %vm186, 0.0
        %190 = vst.msk [vmem:[#allocation2 + $0x18] sm:$0xff] %vm186, 0.0
        %191 = vst.msk [vmem:[#allocation2 + $0x20] sm:$0xff] %vm186, 0.0
        %192 = vst.msk [vmem:[#allocation2 + $0x28] sm:$0xff] %vm186, 0.0
        %193 = vst.msk [vmem:[#allocation2 + $0x30] sm:$0xff] %vm186, 0.0
        %194 = vst.msk [vmem:[#allocation2 + $0x38] sm:$0xff] %vm186, 0.0
      $region32: #{tpu_custom_call.1} parent=27 // pred_fallthru
        _
      %v195 = vld [vmem:[%s167] sm:$0xf]
      %v196 = vld [vmem:[%s167 + $0x4] sm:$0xf]
      %v197 = vld [vmem:[%s167 + $0x8] sm:$0xf]
      %v198 = vld [vmem:[%s167 + $0xc] sm:$0xf]
      %v199 = vld [vmem:[%s167 + $0x10] sm:$0xf]
      %v200 = vld [vmem:[%s167 + $0x14] sm:$0xf]
      %v201 = vld [vmem:[%s167 + $0x18] sm:$0xf]
      %v202 = vld [vmem:[%s167 + $0x1c] sm:$0xf]
      %v203 = vld [vmem:[%s173] sm:$0xf]
      %v204 = vld [vmem:[%s173 + $0x4] sm:$0xf]
      %v205 = vld [vmem:[%s173 + $0x8] sm:$0xf]
      %v206 = vld [vmem:[%s173 + $0xc] sm:$0xf]
      %v207 = vld [vmem:[%s173 + $0x10] sm:$0xf]
      %v208 = vld [vmem:[%s173 + $0x14] sm:$0xf]
      %v209 = vld [vmem:[%s173 + $0x18] sm:$0xf]
      %v210 = vld [vmem:[%s173 + $0x1c] sm:$0xf]
      %v211 = vld [vmem:[%s173 + $0x20] sm:$0xf]
      %v212 = vld [vmem:[%s173 + $0x24] sm:$0xf]
      %v213 = vld [vmem:[%s173 + $0x28] sm:$0xf]
      %v214 = vld [vmem:[%s173 + $0x2c] sm:$0xf]
      %v215 = vld [vmem:[%s173 + $0x30] sm:$0xf]
      %v216 = vld [vmem:[%s173 + $0x34] sm:$0xf]
      %v217 = vld [vmem:[%s173 + $0x38] sm:$0xf]
      %v218 = vld [vmem:[%s173 + $0x3c] sm:$0xf]
      %v227 = vunpack.c.l.b16 %v195
      %v228 = vunpack.c.l.b16 %v196
      %v229 = vunpack.c.l.b16 %v197
      %v230 = vunpack.c.l.b16 %v198
      %v231 = vunpack.c.l.b16 %v199
      %v232 = vunpack.c.l.b16 %v200
      %v233 = vunpack.c.l.b16 %v201
      %v234 = vunpack.c.l.b16 %v202
      %v235 = vpack.c.b16 %v228, %v227
      %v236 = vpack.c.b16 %v230, %v229
      %v237 = vpack.c.b16 %v232, %v231
      %v238 = vpack.c.b16 %v234, %v233
      %v255 = vunpack.c.l.b16 %v203
      %v256 = vunpack.c.l.b16 %v204
      %v257 = vunpack.c.l.b16 %v205
      %v258 = vunpack.c.l.b16 %v206
      %v259 = vunpack.c.l.b16 %v207
      %v260 = vunpack.c.l.b16 %v208
      %v261 = vunpack.c.l.b16 %v209
      %v262 = vunpack.c.l.b16 %v210
      %v263 = vunpack.c.l.b16 %v211
      %v264 = vunpack.c.l.b16 %v212
      %v265 = vunpack.c.l.b16 %v213
      %v266 = vunpack.c.l.b16 %v214
      %v267 = vunpack.c.l.b16 %v215
      %v268 = vunpack.c.l.b16 %v216
      %v269 = vunpack.c.l.b16 %v217
      %v270 = vunpack.c.l.b16 %v218
      %v271 = vpack.c.b16 %v256, %v255
      %v272 = vpack.c.b16 %v258, %v257
      %v273 = vpack.c.b16 %v260, %v259
      %v274 = vpack.c.b16 %v262, %v261
      %v275 = vpack.c.b16 %v264, %v263
      %v276 = vpack.c.b16 %v266, %v265
      %v277 = vpack.c.b16 %v268, %v267
      %v278 = vpack.c.b16 %v270, %v269
      %vm279 = vcmask 261120
      %v281 = vsel %vm279, %v235, 0
      %v284 = vsel %vm279, %v236, 0
      %v287 = vsel %vm279, %v237, 0
      %v290 = vsel %vm279, %v238, 0
      %v293 = vsel %vm279, %v271, 0
      %v296 = vsel %vm279, %v272, 0
      %v299 = vsel %vm279, %v273, 0
      %v302 = vsel %vm279, %v274, 0
      %v305 = vsel %vm279, %v275, 0
      %v308 = vsel %vm279, %v276, 0
      %v311 = vsel %vm279, %v277, 0
      %v314 = vsel %vm279, %v278, 0
      %316 = vmatprep.subr.bf16.mxu0 0
      %317 = vmatpush1.bf16.xpose.msra.mxu0 %v314
      %318 = vmatprep.subr.bf16.mxu0 0
      %319 = vmatpush1.bf16.xpose.msra.mxu0 %v311
      %320 = vmatprep.subr.bf16.mxu0 0
      %321 = vmatpush1.bf16.xpose.msra.mxu0 %v308
      %322 = vmatprep.subr.bf16.mxu0 0
      %323 = vmatpush1.bf16.xpose.msra.mxu0 %v305
      %324 = vmatprep.subr.bf16.mxu0 0
      %325 = vmatpush1.bf16.xpose.msra.mxu0 %v302
      %326 = vmatprep.subr.bf16.mxu0 0
      %327 = vmatpush1.bf16.xpose.msra.mxu0 %v299
      %328 = vmatprep.subr.bf16.mxu0 0
      %329 = vmatpush1.bf16.xpose.msra.mxu0 %v296
      %330 = vmatprep.subr.bf16.mxu0 0
      %331 = vmatpush1.bf16.xpose.msra.mxu0 %v293
      %332 = vmatprep.subr.bf16.mxu0 0
      %333 = vmatpush2.bf16.xpose.msra.mxu0 0
      %334 = vmatprep.subr.bf16.mxu0 0
      %335 = vmatpush2.bf16.xpose.msra.mxu0 0
      %336 = vmatprep.subr.bf16.mxu0 0
      %337 = vmatpush2.bf16.xpose.msra.mxu0 0
      %338 = vmatprep.subr.bf16.mxu0 0
      %339 = vmatpush2.bf16.xpose.msra.mxu0 0
      %340 = vmatprep.subr.bf16.mxu0 0
      %341 = vmatpush2.bf16.xpose.msra.mxu0 0
      %342 = vmatprep.subr.bf16.mxu0 0
      %343 = vmatpush2.bf16.xpose.msra.mxu0 0
      %344 = vmatprep.subr.bf16.mxu0 0
      %345 = vmatpush2.bf16.xpose.msra.mxu0 0
      %346 = vmatprep.subr.bf16.mxu0 0
      %347 = vmatpush2.bf16.xpose.msra.mxu0 0
      %348 = vmatprep.mubr.bf16.mxu0 0
      %349 = vmatmul.mubr.bf16.gmra.mxu0 %v281
      %v350 = vpop.f32.mrf.mxu0
      %v351 = vadd.f32 0.0, %v350
      %v352 = vpop.f32.mrf.mxu0
      %v353 = vpop.f32.mrf.mxu0
      %v354 = vadd.f32 0.0, %v353
      %v355 = vpop.f32.mrf.mxu0
      %356 = vmatprep.mubr.bf16.mxu0 0
      %357 = vmatmul.mubr.bf16.gmra.mxu0 %v284
      %v358 = vpop.f32.mrf.mxu0
      %v359 = vadd.f32 0.0, %v358
      %v360 = vpop.f32.mrf.mxu0
      %v361 = vpop.f32.mrf.mxu0
      %v362 = vadd.f32 0.0, %v361
      %v363 = vpop.f32.mrf.mxu0
      %364 = vmatprep.mubr.bf16.mxu0 0
      %365 = vmatmul.mubr.bf16.gmra.mxu0 %v287
      %v366 = vpop.f32.mrf.mxu0
      %v367 = vadd.f32 0.0, %v366
      %v368 = vpop.f32.mrf.mxu0
      %v369 = vpop.f32.mrf.mxu0
      %v370 = vadd.f32 0.0, %v369
      %v371 = vpop.f32.mrf.mxu0
      %372 = vmatprep.mubr.bf16.mxu0 0
      %373 = vmatmul.mubr.bf16.gmra.mxu0 %v290
      %v374 = vpop.f32.mrf.mxu0
      %v375 = vadd.f32 0.0, %v374
      %v376 = vpop.f32.mrf.mxu0
      %v377 = vpop.f32.mrf.mxu0
      %v378 = vadd.f32 0.0, %v377
      %v379 = vpop.f32.mrf.mxu0
      %380 = vdwg.mxu0
      %v381 = vld [vmem:[#allocation2] sm:$0xff]
      %v382 = vld [vmem:[#allocation2 + $0x8] sm:$0xff]
      %v383 = vld [vmem:[#allocation2 + $0x10] sm:$0xff]
      %v384 = vld [vmem:[#allocation2 + $0x18] sm:$0xff]
      %v385 = vld [vmem:[#allocation2 + $0x20] sm:$0xff]
      %v386 = vld [vmem:[#allocation2 + $0x28] sm:$0xff]
      %v387 = vld [vmem:[#allocation2 + $0x30] sm:$0xff]
      %v388 = vld [vmem:[#allocation2 + $0x38] sm:$0xff]
      %v389 = vsub.f32 %v351, 2.0
      %v390 = vsub.f32 %v354, 2.0
      %v391 = vsub.f32 %v359, 2.0
      %v392 = vsub.f32 %v362, 2.0
      %v393 = vsub.f32 %v367, 2.0
      %v394 = vsub.f32 %v370, 2.0
      %v395 = vsub.f32 %v375, 2.0
      %v396 = vsub.f32 %v378, 2.0
      %v397 = vmul.f32 %v389, 1.442695
      %v398 = vpow.pop %v397
      %v399 = vmul.f32 %v390, 1.442695
      %v400 = vpow.pop %v399
      %v401 = vmul.f32 %v391, 1.442695
      %v402 = vpow.pop %v401
      %v403 = vmul.f32 %v392, 1.442695
      %v404 = vpow.pop %v403
      %v405 = vmul.f32 %v393, 1.442695
      %v406 = vpow.pop %v405
      %v407 = vmul.f32 %v394, 1.442695
      %v408 = vpow.pop %v407
      %v409 = vmul.f32 %v395, 1.442695
      %v410 = vpow.pop %v409
      %v411 = vmul.f32 %v396, 1.442695
      %v412 = vpow.pop %v411
      %413 = vadd.xlane.f32.xlu0 %v398
      %v414 = vpop.xlane.xlu0 %413
      %415 = vadd.xlane.f32.xlu0 %v400
      %v416 = vpop.xlane.xlu0 %415
      %417 = vadd.xlane.f32.xlu0 %v402
      %v418 = vpop.xlane.xlu0 %417
      %419 = vadd.xlane.f32.xlu0 %v404
      %v420 = vpop.xlane.xlu0 %419
      %421 = vadd.xlane.f32.xlu0 %v406
      %v422 = vpop.xlane.xlu0 %421
      %423 = vadd.xlane.f32.xlu0 %v408
      %v424 = vpop.xlane.xlu0 %423
      %425 = vadd.xlane.f32.xlu0 %v410
      %v426 = vpop.xlane.xlu0 %425
      %427 = vadd.xlane.f32.xlu0 %v412
      %v428 = vpop.xlane.xlu0 %427
      %v429 = vadd.f32 %v381, %v414
      %v430 = vadd.f32 %v382, %v416
      %v431 = vadd.f32 %v383, %v418
      %v432 = vadd.f32 %v384, %v420
      %v433 = vadd.f32 %v385, %v422
      %v434 = vadd.f32 %v386, %v424
      %v435 = vadd.f32 %v387, %v426
      %v436 = vadd.f32 %v388, %v428
      %vm437 = vcmask 7168
      %438 = vst.msk [vmem:[#allocation2] sm:$0xff] %vm437, %v429
      %439 = vst.msk [vmem:[#allocation2 + $0x8] sm:$0xff] %vm437, %v430
      %440 = vst.msk [vmem:[#allocation2 + $0x10] sm:$0xff] %vm437, %v431
      %441 = vst.msk [vmem:[#allocation2 + $0x18] sm:$0xff] %vm437, %v432
      %442 = vst.msk [vmem:[#allocation2 + $0x20] sm:$0xff] %vm437, %v433
      %443 = vst.msk [vmem:[#allocation2 + $0x28] sm:$0xff] %vm437, %v434
      %444 = vst.msk [vmem:[#allocation2 + $0x30] sm:$0xff] %vm437, %v435
      %445 = vst.msk [vmem:[#allocation2 + $0x38] sm:$0xff] %vm437, %v436
      // Predicated region
      $region33: #{tpu_custom_call.1} parent=27 // pred_check
        %p446 = pneg %p182
      $region34: #{tpu_custom_call.1} parent=27 // pred_check_branch
        %448 = sbr.rel (%p446) target = $region36
      $region35: #{tpu_custom_call.1} parent=27 // pred_region
        %v449 = vld [vmem:[#allocation2] sm:$0xff]
        %v450 = vld [vmem:[#allocation2 + $0x8] sm:$0xff]
        %v451 = vld [vmem:[#allocation2 + $0x10] sm:$0xff]
        %v452 = vld [vmem:[#allocation2 + $0x18] sm:$0xff]
        %v453 = vld [vmem:[#allocation2 + $0x20] sm:$0xff]
        %v454 = vld [vmem:[#allocation2 + $0x28] sm:$0xff]
        %v455 = vld [vmem:[#allocation2 + $0x30] sm:$0xff]
        %v456 = vld [vmem:[#allocation2 + $0x38] sm:$0xff]
        %457 = vst.msk [vmem:[%s179] sm:$0xff] %vm437, %v449
        %458 = vst.msk [vmem:[%s179 + $0x8] sm:$0xff] %vm437, %v450
        %459 = vst.msk [vmem:[%s179 + $0x10] sm:$0xff] %vm437, %v451
        %460 = vst.msk [vmem:[%s179 + $0x18] sm:$0xff] %vm437, %v452
        %461 = vst.msk [vmem:[%s179 + $0x20] sm:$0xff] %vm437, %v453
        %462 = vst.msk [vmem:[%s179 + $0x28] sm:$0xff] %vm437, %v454
        %463 = vst.msk [vmem:[%s179 + $0x30] sm:$0xff] %vm437, %v455
        %464 = vst.msk [vmem:[%s179 + $0x38] sm:$0xff] %vm437, %v456
      $region36: #{tpu_custom_call.1} parent=27 // pred_fallthru
        _
      %s465 = smul.u32 8, %s17
      %p466 = scmp.lt.s32.totalorder %s465, 15
      %s467 = scalar_select %p466, %s465, 15
      %s468 = smul.addr %s467, 8
      %s469 = scalar_lea.vmem %s2, %s468
      // Predicated region
      $region37: #{tpu_custom_call.1} parent=27 // pred_check
        %p470 = pneg %p95
      $region38: #{tpu_custom_call.1} parent=27 // pred_check_branch
        %472 = sbr.rel (%p470) target = $region40
      $region39: #{tpu_custom_call.1} parent=27 // pred_region
        %s473 = smul.u32 8, %s17
      $region40: #{tpu_custom_call.1} parent=27 // pred_fallthru
        _
    $region28: #{tpu_custom_call.1} parent=5 // pred_fallthru
      _
    %p474 = scmp.le.s32.totalorder 2, %s8
    // Predicated region
    $region41: #{tpu_custom_call.1} parent=5 // pred_check
      %p475 = pneg %p474
    $region42: #{tpu_custom_call.1} parent=5 // pred_check_branch
      %477 = sbr.rel (%p475) target = $region44
    $region43: #{tpu_custom_call.1} parent=5 // pred_region
      %s478 = ssub.s32 %s8, 2
      // Predicated region
      $region45: #{tpu_custom_call.1} parent=43 // pred_check
        %p479 = pneg %p101
      $region46: #{tpu_custom_call.1} parent=43 // pred_check_branch
        %481 = sbr.rel (%p479) target = $region48
      $region47: #{tpu_custom_call.1} parent=43 // pred_region
        %s482 = smul.u32 8, %s19
        %p483 = scmp.lt.s32.totalorder %s482, 15
        %s484 = scalar_select %p483, %s482, 15
        %s485 = smul.addr %s484, 8
        %s486 = scalar_lea.vmem %s2, %s485
      $region48: #{tpu_custom_call.1} parent=43 // pred_fallthru
        _
    $region44: #{tpu_custom_call.1} parent=5 // pred_fallthru
      _
  $region6: #{tpu_custom_call.1} parent=0 // loop_footer
    %s12 = sadd.s32 1, %s8
  $region7: #{tpu_custom_call.1} parent=0 // loop_footer_branch
    %7 = sbr.rel target = $region3
  $region8: #{tpu_custom_call.1} parent=0 // loop_exit
    _

</llo_original>
